<compile_context>
chip_gen: v7x
topology: tpu7x:2x2x1
jax: 0.10.0
libtpu: 0.0.40
codegen_flags: <defaults>
</compile_context>

<pallas_src>
import math
from functools import partial

import jax
import jax.numpy as jnp
from jax import lax
from jax.experimental import pallas as pl
from jax.experimental.pallas import tpu as pltpu


def _gelu(x):
    # tanh-approximate GELU (identical formula used in the kernel and the
    # reference so the numeric check is exact up to f32 rounding).
    # TODO(synk): PyTorch nn.GELU default is the erf form; difference is <1e-3.
    return jax.nn.gelu(x, approximate=True)


# ---------------------------------------------------------------------------
# Fused kernel: one batch element per grid step, everything in VMEM.
# ---------------------------------------------------------------------------
def leff_kernel(H, W, x_ref, w1_ref, b1_ref, wd_ref, bd_ref, w2_ref, b2_ref,
                o_ref, xp_ref):
    """
    x_ref : (1, H*W, dim)        input tokens for this batch element
    w1_ref: (dim, hidden)        b1_ref: (1, hidden)
    wd_ref: (9, hidden)          bd_ref: (1, hidden)   depthwise 3x3 taps
    w2_ref: (hidden, dim)        b2_ref: (1, dim)
    o_ref : (1, H*W, dim)
    xp_ref: (H+2, W+2, hidden)   VMEM scratch holding the zero-padded hidden map
    """
    hw, dim = x_ref.shape[1], x_ref.shape[2]
    hidden = w1_ref.shape[1]

    # ---- linear1 + GELU : single MXU matmul, output lane-dense (N=hidden=128)
    x = x_ref[0]                                              # (hw, dim)
    h = jnp.dot(x, w1_ref[...], preferred_element_type=jnp.float32) + b1_ref[...]
    h = _gelu(h)                                              # (hw, hidden)

    # ---- depthwise 3x3 conv + GELU : VPU 9-tap accumulate over padded scratch
    xp_ref[...] = jnp.zeros(xp_ref.shape, xp_ref.dtype)       # zero the halo
    xp_ref[1:H + 1, 1:W + 1, :] = h.reshape(H, W, hidden)
    xp = xp_ref[...]                                          # (H+2, W+2, hidden)
    wd = wd_ref[...]                                          # (9, hidden)
    acc = jnp.zeros((H, W, hidden), jnp.float32)
    for dh in range(3):                                       # statically unrolled
        for dw in range(3):
            tap = wd[dh * 3 + dw].reshape(1, 1, hidden)       # per-channel weight
            acc = acc + xp[dh:dh + H, dw:dw + W, :] * tap
    acc = _gelu(acc + bd_ref[...].reshape(1, 1, hidden))      # (H, W, hidden)

    # ---- linear2 : single MXU matmul, K=hidden=128
    y = jnp.dot(acc.reshape(hw, hidden), w2_ref[...],
                preferred_element_type=jnp.float32) + b2_ref[...]
    o_ref[...] = y.reshape(1, hw, dim).astype(o_ref.dtype)


# ---------------------------------------------------------------------------
# Wrapper
# ---------------------------------------------------------------------------
def leff_forward(x, params):
    """x: (B, hw, dim) token tensor, hw must be a perfect square."""
    B, hw, dim = x.shape
    H = W = int(math.sqrt(hw))
    hidden = params["w1"].shape[1]

    kernel = partial(leff_kernel, H, W)
    return pl.pallas_call(
        kernel,
        out_shape=jax.ShapeDtypeStruct((B, hw, dim), x.dtype),
        grid=(B,),
        in_specs=[
            pl.BlockSpec((1, hw, dim), lambda b: (b, 0, 0)),     # x
            pl.BlockSpec((dim, hidden), lambda b: (0, 0)),       # w1
            pl.BlockSpec((1, hidden), lambda b: (0, 0)),         # b1
            pl.BlockSpec((9, hidden), lambda b: (0, 0)),         # wd (3x3 taps)
            pl.BlockSpec((1, hidden), lambda b: (0, 0)),         # bd
            pl.BlockSpec((hidden, dim), lambda b: (0, 0)),       # w2
            pl.BlockSpec((1, dim), lambda b: (0, 0)),            # b2
        ],
        out_specs=pl.BlockSpec((1, hw, dim), lambda b: (b, 0, 0)),
        scratch_shapes=[pltpu.VMEM((H + 2, W + 2, hidden), jnp.float32)],
        compiler_params=pltpu.CompilerParams(
            dimension_semantics=("parallel",)),
    )(x, params["w1"], params["b1"], params["wd"], params["bd"],
      params["w2"], params["b2"])


# ---------------------------------------------------------------------------
# Parameter init (shapes match the PyTorch module; layout chosen for TPU)
# ---------------------------------------------------------------------------
def init_params(key, dim=32, hidden=128):
    k = jax.random.split(key, 6)
    return {
        "w1": (1.0 / math.sqrt(dim)) *
              jax.random.normal(k[0], (dim, hidden), jnp.float32),
        "b1": 0.01 * jax.random.normal(k[1], (1, hidden), jnp.float32),
        # depthwise conv weight: PyTorch (hidden, 1, 3, 3) stored as (9, hidden)
        "wd": (1.0 / 3.0) *
              jax.random.normal(k[2], (9, hidden), jnp.float32),
        "bd": 0.01 * jax.random.normal(k[3], (1, hidden), jnp.float32),
        "w2": (1.0 / math.sqrt(hidden)) *
              jax.random.normal(k[4], (hidden, dim), jnp.float32),
        "b2": 0.01 * jax.random.normal(k[5], (1, dim), jnp.float32),
    }


# ---------------------------------------------------------------------------
# Pure-JAX reference (numerical sanity check)
# ---------------------------------------------------------------------------
def leff_ref(x, params):
    B, hw, dim = x.shape
    H = W = int(math.sqrt(hw))
    hidden = params["w1"].shape[1]
    h = _gelu(x @ params["w1"] + params["b1"])                 # (B, hw, hidden)
    h = h.reshape(B, H, W, hidden)                             # NHWC
    wd = params["wd"].reshape(3, 3, 1, hidden)                 # HWIO, depthwise
    h = lax.conv_general_dilated(
        h, wd, window_strides=(1, 1), padding="SAME",
        dimension_numbers=("NHWC", "HWIO", "NHWC"),
        feature_group_count=hidden)
    h = _gelu(h + params["bd"].reshape(1, 1, 1, hidden))
    h = h.reshape(B, hw, hidden)
    return h @ params["w2"] + params["b2"]


# ---------------------------------------------------------------------------
if __name__ == "__main__":
    B, H, W = 2, 8, 8                  # hw = 64 tokens (perfect square)
    dim, hidden = 32, 128              # module defaults: dim=32, hidden_dim=128
    hw = H * W

    key = jax.random.PRNGKey(0)
    kx, kp = jax.random.split(key)
    x = jax.random.normal(kx, (B, hw, dim), jnp.float32)
    params = init_params(kp, dim, hidden)

    out = jax.block_until_ready(leff_forward(x, params))
    ref = jax.block_until_ready(leff_ref(x, params))

    assert out.shape == (B, hw, dim)
    err = float(jnp.max(jnp.abs(out - ref)))
    assert err < 1e-3, f"max abs err {err}"
    print("KERNEL_OK")
</pallas_src>

<mosaic_0001>
module attributes {stable_mosaic.version = 11 : i64} {
  func.func @leff_kernel(%arg0: i32, %arg1: memref<1x64x32xf32, #tpu.memory_space<vmem>>, %arg2: memref<32x128xf32, #tpu.memory_space<vmem>>, %arg3: memref<1x128xf32, #tpu.memory_space<vmem>>, %arg4: memref<9x128xf32, #tpu.memory_space<vmem>>, %arg5: memref<1x128xf32, #tpu.memory_space<vmem>>, %arg6: memref<128x32xf32, #tpu.memory_space<vmem>>, %arg7: memref<1x32xf32, #tpu.memory_space<vmem>>, %arg8: memref<1x64x32xf32, #tpu.memory_space<vmem>>, %arg9: memref<10x10x128xf32, #tpu.memory_space<vmem>>) attributes {dimension_semantics = [#tpu.dimension_semantics<parallel>], iteration_bounds = array<i64: 2>, scalar_prefetch = 0 : i64, scratch_operands = 1 : i64, tpu.core_type = #tpu.core_type<tc>, window_params = [{transform_indices = @transform_0, window_bounds = array<i64: 1, 64, 32>}, {pipeline_mode = #tpu.pipeline_mode<synchronous>, transform_indices = @transform_1, window_bounds = array<i64: 32, 128>}, {pipeline_mode = #tpu.pipeline_mode<synchronous>, transform_indices = @transform_2, window_bounds = array<i64: 1, 128>}, {pipeline_mode = #tpu.pipeline_mode<synchronous>, transform_indices = @transform_3, window_bounds = array<i64: 9, 128>}, {pipeline_mode = #tpu.pipeline_mode<synchronous>, transform_indices = @transform_4, window_bounds = array<i64: 1, 128>}, {pipeline_mode = #tpu.pipeline_mode<synchronous>, transform_indices = @transform_5, window_bounds = array<i64: 128, 32>}, {pipeline_mode = #tpu.pipeline_mode<synchronous>, transform_indices = @transform_6, window_bounds = array<i64: 1, 32>}, {transform_indices = @transform_7, window_bounds = array<i64: 1, 64, 32>}]} {
    %c0 = arith.constant 0 : index
    %c0_0 = arith.constant 0 : index
    %c0_1 = arith.constant 0 : index
    %0 = vector.load %arg1[%c0, %c0_0, %c0_1] : memref<1x64x32xf32, #tpu.memory_space<vmem>>, vector<1x64x32xf32>
    %1 = vector.shape_cast %0 : vector<1x64x32xf32> to vector<64x32xf32>
    %c0_2 = arith.constant 0 : index
    %c0_3 = arith.constant 0 : index
    %2 = vector.load %arg2[%c0_2, %c0_3] : memref<32x128xf32, #tpu.memory_space<vmem>>, vector<32x128xf32>
    %cst = arith.constant dense<0.000000e+00> : vector<64x128xf32>
    %3 = tpu.matmul %1, %2, %cst {dimension_numbers = #tpu.dot_dimension_numbers<[1], [0], [0], [1], [0, 0, 1, 1], [], []>} : vector<64x32xf32>, vector<32x128xf32>, vector<64x128xf32> -> vector<64x128xf32>
    %c0_4 = arith.constant 0 : index
    %c0_5 = arith.constant 0 : index
    %4 = vector.load %arg3[%c0_4, %c0_5] : memref<1x128xf32, #tpu.memory_space<vmem>>, vector<1x128xf32>
    %5 = vector.broadcast %4 : vector<1x128xf32> to vector<64x128xf32>
    %6 = arith.addf %3, %5 : vector<64x128xf32>
    %7 = arith.mulf %6, %6 : vector<64x128xf32>
    %8 = arith.mulf %6, %7 : vector<64x128xf32>
    %cst_6 = arith.constant 4.471500e-02 : f32
    %9 = vector.broadcast %cst_6 : f32 to vector<64x128xf32>
    %10 = arith.mulf %9, %8 : vector<64x128xf32>
    %11 = arith.addf %6, %10 : vector<64x128xf32>
    %cst_7 = arith.constant 0.797884583 : f32
    %12 = vector.broadcast %cst_7 : f32 to vector<64x128xf32>
    %13 = arith.mulf %12, %11 : vector<64x128xf32>
    %14 = math.tanh %13 : vector<64x128xf32>
    %cst_8 = arith.constant 1.000000e+00 : f32
    %15 = vector.broadcast %cst_8 : f32 to vector<64x128xf32>
    %16 = arith.addf %15, %14 : vector<64x128xf32>
    %cst_9 = arith.constant 5.000000e-01 : f32
    %17 = vector.broadcast %cst_9 : f32 to vector<64x128xf32>
    %18 = arith.mulf %17, %16 : vector<64x128xf32>
    %19 = arith.mulf %6, %18 : vector<64x128xf32>
    %cst_10 = arith.constant 0.000000e+00 : f32
    %20 = vector.broadcast %cst_10 : f32 to vector<10x10x128xf32>
    %c0_11 = arith.constant 0 : index
    %c0_12 = arith.constant 0 : index
    %c0_13 = arith.constant 0 : index
    %21 = vector.load %arg9[%c0_11, %c0_12, %c0_13] : memref<10x10x128xf32, #tpu.memory_space<vmem>>, vector<10x10x128xf32>
    tpu.vector_store %arg9[%c0_11, %c0_12, %c0_13], %20 {strides = array<i32>} : memref<10x10x128xf32, #tpu.memory_space<vmem>>, vector<10x10x128xf32>,
    %22 = vector.shape_cast %19 : vector<64x128xf32> to vector<8x8x128xf32>
    %c1 = arith.constant 1 : index
    %c1_14 = arith.constant 1 : index
    %c0_15 = arith.constant 0 : index
    %23 = vector.load %arg9[%c1, %c1_14, %c0_15] : memref<10x10x128xf32, #tpu.memory_space<vmem>>, vector<8x8x128xf32>
    tpu.vector_store %arg9[%c1, %c1_14, %c0_15], %22 {strides = array<i32>} : memref<10x10x128xf32, #tpu.memory_space<vmem>>, vector<8x8x128xf32>,
    %c0_16 = arith.constant 0 : index
    %c0_17 = arith.constant 0 : index
    %c0_18 = arith.constant 0 : index
    %24 = vector.load %arg9[%c0_16, %c0_17, %c0_18] : memref<10x10x128xf32, #tpu.memory_space<vmem>>, vector<10x10x128xf32>
    %c0_19 = arith.constant 0 : index
    %c0_20 = arith.constant 0 : index
    %25 = vector.load %arg4[%c0_19, %c0_20] : memref<9x128xf32, #tpu.memory_space<vmem>>, vector<9x128xf32>
    %cst_21 = arith.constant 0.000000e+00 : f32
    %26 = vector.broadcast %cst_21 : f32 to vector<8x8x128xf32>
    %27 = vector.extract_strided_slice %25 {offsets = [0, 0], sizes = [1, 128], strides = [1, 1]} : vector<9x128xf32> to vector<1x128xf32>
    %28 = vector.shape_cast %27 : vector<1x128xf32> to vector<128xf32>
    %29 = vector.shape_cast %28 : vector<128xf32> to vector<1x1x128xf32>
    %30 = vector.extract_strided_slice %24 {offsets = [0, 0, 0], sizes = [8, 8, 128], strides = [1, 1, 1]} : vector<10x10x128xf32> to vector<8x8x128xf32>
    %31 = vector.broadcast %29 : vector<1x1x128xf32> to vector<8x8x128xf32>
    %32 = arith.mulf %30, %31 : vector<8x8x128xf32>
    %33 = arith.addf %26, %32 : vector<8x8x128xf32>
    %34 = vector.extract_strided_slice %25 {offsets = [1, 0], sizes = [1, 128], strides = [1, 1]} : vector<9x128xf32> to vector<1x128xf32>
    %35 = vector.shape_cast %34 : vector<1x128xf32> to vector<128xf32>
    %36 = vector.shape_cast %35 : vector<128xf32> to vector<1x1x128xf32>
    %37 = vector.extract_strided_slice %24 {offsets = [0, 1, 0], sizes = [8, 8, 128], strides = [1, 1, 1]} : vector<10x10x128xf32> to vector<8x8x128xf32>
    %38 = vector.broadcast %36 : vector<1x1x128xf32> to vector<8x8x128xf32>
    %39 = arith.mulf %37, %38 : vector<8x8x128xf32>
    %40 = arith.addf %33, %39 : vector<8x8x128xf32>
    %41 = vector.extract_strided_slice %25 {offsets = [2, 0], sizes = [1, 128], strides = [1, 1]} : vector<9x128xf32> to vector<1x128xf32>
    %42 = vector.shape_cast %41 : vector<1x128xf32> to vector<128xf32>
    %43 = vector.shape_cast %42 : vector<128xf32> to vector<1x1x128xf32>
    %44 = vector.extract_strided_slice %24 {offsets = [0, 2, 0], sizes = [8, 8, 128], strides = [1, 1, 1]} : vector<10x10x128xf32> to vector<8x8x128xf32>
    %45 = vector.broadcast %43 : vector<1x1x128xf32> to vector<8x8x128xf32>
    %46 = arith.mulf %44, %45 : vector<8x8x128xf32>
    %47 = arith.addf %40, %46 : vector<8x8x128xf32>
    %48 = vector.extract_strided_slice %25 {offsets = [3, 0], sizes = [1, 128], strides = [1, 1]} : vector<9x128xf32> to vector<1x128xf32>
    %49 = vector.shape_cast %48 : vector<1x128xf32> to vector<128xf32>
    %50 = vector.shape_cast %49 : vector<128xf32> to vector<1x1x128xf32>
    %51 = vector.extract_strided_slice %24 {offsets = [1, 0, 0], sizes = [8, 8, 128], strides = [1, 1, 1]} : vector<10x10x128xf32> to vector<8x8x128xf32>
    %52 = vector.broadcast %50 : vector<1x1x128xf32> to vector<8x8x128xf32>
    %53 = arith.mulf %51, %52 : vector<8x8x128xf32>
    %54 = arith.addf %47, %53 : vector<8x8x128xf32>
    %55 = vector.extract_strided_slice %25 {offsets = [4, 0], sizes = [1, 128], strides = [1, 1]} : vector<9x128xf32> to vector<1x128xf32>
    %56 = vector.shape_cast %55 : vector<1x128xf32> to vector<128xf32>
    %57 = vector.shape_cast %56 : vector<128xf32> to vector<1x1x128xf32>
    %58 = vector.extract_strided_slice %24 {offsets = [1, 1, 0], sizes = [8, 8, 128], strides = [1, 1, 1]} : vector<10x10x128xf32> to vector<8x8x128xf32>
    %59 = vector.broadcast %57 : vector<1x1x128xf32> to vector<8x8x128xf32>
    %60 = arith.mulf %58, %59 : vector<8x8x128xf32>
    %61 = arith.addf %54, %60 : vector<8x8x128xf32>
    %62 = vector.extract_strided_slice %25 {offsets = [5, 0], sizes = [1, 128], strides = [1, 1]} : vector<9x128xf32> to vector<1x128xf32>
    %63 = vector.shape_cast %62 : vector<1x128xf32> to vector<128xf32>
    %64 = vector.shape_cast %63 : vector<128xf32> to vector<1x1x128xf32>
    %65 = vector.extract_strided_slice %24 {offsets = [1, 2, 0], sizes = [8, 8, 128], strides = [1, 1, 1]} : vector<10x10x128xf32> to vector<8x8x128xf32>
    %66 = vector.broadcast %64 : vector<1x1x128xf32> to vector<8x8x128xf32>
    %67 = arith.mulf %65, %66 : vector<8x8x128xf32>
    %68 = arith.addf %61, %67 : vector<8x8x128xf32>
    %69 = vector.extract_strided_slice %25 {offsets = [6, 0], sizes = [1, 128], strides = [1, 1]} : vector<9x128xf32> to vector<1x128xf32>
    %70 = vector.shape_cast %69 : vector<1x128xf32> to vector<128xf32>
    %71 = vector.shape_cast %70 : vector<128xf32> to vector<1x1x128xf32>
    %72 = vector.extract_strided_slice %24 {offsets = [2, 0, 0], sizes = [8, 8, 128], strides = [1, 1, 1]} : vector<10x10x128xf32> to vector<8x8x128xf32>
    %73 = vector.broadcast %71 : vector<1x1x128xf32> to vector<8x8x128xf32>
    %74 = arith.mulf %72, %73 : vector<8x8x128xf32>
    %75 = arith.addf %68, %74 : vector<8x8x128xf32>
    %76 = vector.extract_strided_slice %25 {offsets = [7, 0], sizes = [1, 128], strides = [1, 1]} : vector<9x128xf32> to vector<1x128xf32>
    %77 = vector.shape_cast %76 : vector<1x128xf32> to vector<128xf32>
    %78 = vector.shape_cast %77 : vector<128xf32> to vector<1x1x128xf32>
    %79 = vector.extract_strided_slice %24 {offsets = [2, 1, 0], sizes = [8, 8, 128], strides = [1, 1, 1]} : vector<10x10x128xf32> to vector<8x8x128xf32>
    %80 = vector.broadcast %78 : vector<1x1x128xf32> to vector<8x8x128xf32>
    %81 = arith.mulf %79, %80 : vector<8x8x128xf32>
    %82 = arith.addf %75, %81 : vector<8x8x128xf32>
    %83 = vector.extract_strided_slice %25 {offsets = [8, 0], sizes = [1, 128], strides = [1, 1]} : vector<9x128xf32> to vector<1x128xf32>
    %84 = vector.shape_cast %83 : vector<1x128xf32> to vector<128xf32>
    %85 = vector.shape_cast %84 : vector<128xf32> to vector<1x1x128xf32>
    %86 = vector.extract_strided_slice %24 {offsets = [2, 2, 0], sizes = [8, 8, 128], strides = [1, 1, 1]} : vector<10x10x128xf32> to vector<8x8x128xf32>
    %87 = vector.broadcast %85 : vector<1x1x128xf32> to vector<8x8x128xf32>
    %88 = arith.mulf %86, %87 : vector<8x8x128xf32>
    %89 = arith.addf %82, %88 : vector<8x8x128xf32>
    %c0_22 = arith.constant 0 : index
    %c0_23 = arith.constant 0 : index
    %90 = vector.load %arg5[%c0_22, %c0_23] : memref<1x128xf32, #tpu.memory_space<vmem>>, vector<1x128xf32>
    %91 = vector.shape_cast %90 : vector<1x128xf32> to vector<1x1x128xf32>
    %92 = vector.broadcast %91 : vector<1x1x128xf32> to vector<8x8x128xf32>
    %93 = arith.addf %89, %92 : vector<8x8x128xf32>
    %94 = arith.mulf %93, %93 : vector<8x8x128xf32>
    %95 = arith.mulf %93, %94 : vector<8x8x128xf32>
    %cst_24 = arith.constant 4.471500e-02 : f32
    %96 = vector.broadcast %cst_24 : f32 to vector<8x8x128xf32>
    %97 = arith.mulf %96, %95 : vector<8x8x128xf32>
    %98 = arith.addf %93, %97 : vector<8x8x128xf32>
    %cst_25 = arith.constant 0.797884583 : f32
    %99 = vector.broadcast %cst_25 : f32 to vector<8x8x128xf32>
    %100 = arith.mulf %99, %98 : vector<8x8x128xf32>
    %101 = math.tanh %100 : vector<8x8x128xf32>
    %cst_26 = arith.constant 1.000000e+00 : f32
    %102 = vector.broadcast %cst_26 : f32 to vector<8x8x128xf32>
    %103 = arith.addf %102, %101 : vector<8x8x128xf32>
    %cst_27 = arith.constant 5.000000e-01 : f32
    %104 = vector.broadcast %cst_27 : f32 to vector<8x8x128xf32>
    %105 = arith.mulf %104, %103 : vector<8x8x128xf32>
    %106 = arith.mulf %93, %105 : vector<8x8x128xf32>
    %107 = vector.shape_cast %106 : vector<8x8x128xf32> to vector<64x128xf32>
    %c0_28 = arith.constant 0 : index
    %c0_29 = arith.constant 0 : index
    %108 = vector.load %arg6[%c0_28, %c0_29] : memref<128x32xf32, #tpu.memory_space<vmem>>, vector<128x32xf32>
    %cst_30 = arith.constant dense<0.000000e+00> : vector<64x32xf32>
    %109 = tpu.matmul %107, %108, %cst_30 {dimension_numbers = #tpu.dot_dimension_numbers<[1], [0], [0], [1], [0, 0, 1, 1], [], []>} : vector<64x128xf32>, vector<128x32xf32>, vector<64x32xf32> -> vector<64x32xf32>
    %c0_31 = arith.constant 0 : index
    %c0_32 = arith.constant 0 : index
    %110 = vector.load %arg7[%c0_31, %c0_32] : memref<1x32xf32, #tpu.memory_space<vmem>>, vector<1x32xf32>
    %111 = vector.broadcast %110 : vector<1x32xf32> to vector<64x32xf32>
    %112 = arith.addf %109, %111 : vector<64x32xf32>
    %113 = vector.shape_cast %112 : vector<64x32xf32> to vector<1x64x32xf32>
    %c0_33 = arith.constant 0 : index
    %c0_34 = arith.constant 0 : index
    %c0_35 = arith.constant 0 : index
    %114 = vector.load %arg8[%c0_33, %c0_34, %c0_35] : memref<1x64x32xf32, #tpu.memory_space<vmem>>, vector<1x64x32xf32>
    tpu.vector_store %arg8[%c0_33, %c0_34, %c0_35], %113 {strides = array<i32>} : memref<1x64x32xf32, #tpu.memory_space<vmem>>, vector<1x64x32xf32>,
    return
  }
  func.func @transform_0(%arg0: i32) -> (i32, i32, i32) {
    %c0_i32 = arith.constant 0 : i32
    %c0_i32_0 = arith.constant 0 : i32
    %c0_i32_1 = arith.constant 0 : i32
    return %arg0, %c0_i32, %c0_i32_0 : i32, i32, i32
  }
  func.func @transform_1(%arg0: i32) -> (i32, i32) {
    %c0_i32 = arith.constant 0 : i32
    %c0_i32_0 = arith.constant 0 : i32
    %c0_i32_1 = arith.constant 0 : i32
    return %c0_i32, %c0_i32_0 : i32, i32
  }
  func.func @transform_2(%arg0: i32) -> (i32, i32) {
    %c0_i32 = arith.constant 0 : i32
    %c0_i32_0 = arith.constant 0 : i32
    %c0_i32_1 = arith.constant 0 : i32
    return %c0_i32, %c0_i32_0 : i32, i32
  }
  func.func @transform_3(%arg0: i32) -> (i32, i32) {
    %c0_i32 = arith.constant 0 : i32
    %c0_i32_0 = arith.constant 0 : i32
    %c0_i32_1 = arith.constant 0 : i32
    return %c0_i32, %c0_i32_0 : i32, i32
  }
  func.func @transform_4(%arg0: i32) -> (i32, i32) {
    %c0_i32 = arith.constant 0 : i32
    %c0_i32_0 = arith.constant 0 : i32
    %c0_i32_1 = arith.constant 0 : i32
    return %c0_i32, %c0_i32_0 : i32, i32
  }
  func.func @transform_5(%arg0: i32) -> (i32, i32) {
    %c0_i32 = arith.constant 0 : i32
    %c0_i32_0 = arith.constant 0 : i32
    %c0_i32_1 = arith.constant 0 : i32
    return %c0_i32, %c0_i32_0 : i32, i32
  }
  func.func @transform_6(%arg0: i32) -> (i32, i32) {
    %c0_i32 = arith.constant 0 : i32
    %c0_i32_0 = arith.constant 0 : i32
    %c0_i32_1 = arith.constant 0 : i32
    return %c0_i32, %c0_i32_0 : i32, i32
  }
  func.func @transform_7(%arg0: i32) -> (i32, i32, i32) {
    %c0_i32 = arith.constant 0 : i32
    %c0_i32_0 = arith.constant 0 : i32
    %c0_i32_1 = arith.constant 0 : i32
    return %arg0, %c0_i32, %c0_i32_0 : i32, i32, i32
  }
}

</mosaic_0001>

<llo_original>
// kernel: tpu_custom_call.1
$region0: #{tpu_custom_call.1}
  #allocation0 [shape = 'u32[]', space=smem, size = 0x4, offset = 0x4, fixed_abs, tag = 'smem constant byte address 0x4 - core index']
  #allocation1 [shape = 'u32[144,128]{1,0:T(1,128)}', space=vmem, size = 0x12000, scoped, tag = 'internal scratch']
  #allocation2 [shape = 'f32[10,10,128]{2,1,0:T(8,128)}', space=vmem, size = 0x14000, scoped, tag = 'scratch operand']
  %s0 = inlined_call_operand.vmem [shape: f32[2,64,32], index: 0, kind: input, shape index: {}]
  %s1 = inlined_call_operand.vmem [shape: f32[32,128], index: 1, kind: input, shape index: {}]
  %s2 = inlined_call_operand.vmem [shape: f32[1,128], index: 2, kind: input, shape index: {}]
  %s3 = inlined_call_operand.vmem [shape: f32[9,128], index: 3, kind: input, shape index: {}]
  %s4 = inlined_call_operand.vmem [shape: f32[1,128], index: 4, kind: input, shape index: {}]
  %s5 = inlined_call_operand.vmem [shape: f32[128,32], index: 5, kind: input, shape index: {}]
  %s6 = inlined_call_operand.vmem [shape: f32[1,32], index: 6, kind: input, shape index: {}]
  %s7 = inlined_call_operand.vmem [shape: f32[2,64,32], index: 7, kind: output, shape index: {}]
  %s8 = sld [smem:[#allocation0]]
  $region61: #{tpu_custom_call.1} parent=0
    _
  %s10 = ssub.s32 1, %s8
  %s11 = scalar_select 0, %s10, %s8
  loop: start=0, step=1, limit=4
  $region2: #{tpu_custom_call.1} parent=0 // loop_pre_header
    _
  $region3: #{tpu_custom_call.1} parent=0 // loop_header
    %s13 = sphi 0, %s17
    %p14 = scmp.ge.s32.totalorder %s13, 4
    %s23 = sphi 0, %s25
    %s26 = sphi 0, %s23
    %s27 = sphi 0, %s26
    %s43 = sphi 0, %s27
    %s47 = sphi 0, %s47
    %s49 = sphi 0, %s47
    %s50 = sphi 0, %s49
    %s64 = sphi 0, %s50
    %s68 = sphi 0, %s68
    %s70 = sphi 0, %s68
    %s71 = sphi 0, %s70
    %s85 = sphi 0, %s71
    %s89 = sphi 0, %s89
    %s91 = sphi 0, %s89
    %s92 = sphi 0, %s91
    %s106 = sphi 0, %s92
    %s110 = sphi 0, %s110
    %s112 = sphi 0, %s110
    %s113 = sphi 0, %s112
    %s127 = sphi 0, %s113
    %s131 = sphi 0, %s131
    %s133 = sphi 0, %s131
    %s134 = sphi 0, %s133
    %s148 = sphi 0, %s134
    %s152 = sphi 0, %s152
    %s154 = sphi 0, %s152
    %s155 = sphi 0, %s154
    %s169 = sphi 0, %s155
    %s175 = sphi 0, %s177
    %s178 = sphi 0, %s175
    %s179 = sphi 0, %s178
    %s195 = sphi 0, %s179
  $region4: #{tpu_custom_call.1} parent=0 // loop_header_branch
    %16 = sbr.rel (%p14) target = $region8
  $region5: #{tpu_custom_call.1} parent=0 // loop_body
    %s18 = ssub.s32 %s13, 1
    %s19 = ssub.s32 %s13, 2
    %s20 = sadd.s32 %s13, 1
    %s21 = ssub.s32 %s13, %s20
    %p22 = scmp.eq.s32.totalorder %s21, 0
    %s24 = sadd.s32 %s23, 1
    %s25 = scalar_select %p22, %s23, %s24
    %p28 = pneg %p22
    %p29 = scmp.eq.s32.totalorder %s13, 1
    %p30 = por %p28, %p29
    %p31 = scmp.ne.s32.totalorder %s23, %s26
    %p32 = scmp.eq.s32.totalorder %s13, 0
    %p33 = por %p31, %p32
    %p34 = scmp.ne.s32.totalorder %s23, %s26
    %p35 = scmp.eq.s32.totalorder %s18, 1
    %p36 = por %p34, %p35
    %p37 = scmp.ne.s32.totalorder %s26, %s27
    %p38 = scmp.eq.s32.totalorder %s18, 0
    %p39 = por %p37, %p38
    %p40 = scmp.ne.s32.totalorder %s26, %s27
    %p41 = scmp.eq.s32.totalorder %s19, 1
    %p42 = por %p40, %p41
    %p44 = scmp.ne.s32.totalorder %s27, %s43
    %p45 = scmp.eq.s32.totalorder %s19, 0
    %p46 = por %p44, %p45
    %s48 = sadd.s32 %s47, 1
    %p51 = scmp.eq.s32.totalorder %s13, 1
    %p52 = scmp.ne.s32.totalorder %s47, %s49
    %p53 = scmp.eq.s32.totalorder %s13, 0
    %p54 = por %p52, %p53
    %p55 = scmp.ne.s32.totalorder %s47, %s49
    %p56 = scmp.eq.s32.totalorder %s18, 1
    %p57 = por %p55, %p56
    %p58 = scmp.ne.s32.totalorder %s49, %s50
    %p59 = scmp.eq.s32.totalorder %s18, 0
    %p60 = por %p58, %p59
    %p61 = scmp.ne.s32.totalorder %s49, %s50
    %p62 = scmp.eq.s32.totalorder %s19, 1
    %p63 = por %p61, %p62
    %p65 = scmp.ne.s32.totalorder %s50, %s64
    %p66 = scmp.eq.s32.totalorder %s19, 0
    %p67 = por %p65, %p66
    %s69 = sadd.s32 %s68, 1
    %p72 = scmp.eq.s32.totalorder %s13, 1
    %p73 = scmp.ne.s32.totalorder %s68, %s70
    %p74 = scmp.eq.s32.totalorder %s13, 0
    %p75 = por %p73, %p74
    %p76 = scmp.ne.s32.totalorder %s68, %s70
    %p77 = scmp.eq.s32.totalorder %s18, 1
    %p78 = por %p76, %p77
    %p79 = scmp.ne.s32.totalorder %s70, %s71
    %p80 = scmp.eq.s32.totalorder %s18, 0
    %p81 = por %p79, %p80
    %p82 = scmp.ne.s32.totalorder %s70, %s71
    %p83 = scmp.eq.s32.totalorder %s19, 1
    %p84 = por %p82, %p83
    %p86 = scmp.ne.s32.totalorder %s71, %s85
    %p87 = scmp.eq.s32.totalorder %s19, 0
    %p88 = por %p86, %p87
    %s90 = sadd.s32 %s89, 1
    %p93 = scmp.eq.s32.totalorder %s13, 1
    %p94 = scmp.ne.s32.totalorder %s89, %s91
    %p95 = scmp.eq.s32.totalorder %s13, 0
    %p96 = por %p94, %p95
    %p97 = scmp.ne.s32.totalorder %s89, %s91
    %p98 = scmp.eq.s32.totalorder %s18, 1
    %p99 = por %p97, %p98
    %p100 = scmp.ne.s32.totalorder %s91, %s92
    %p101 = scmp.eq.s32.totalorder %s18, 0
    %p102 = por %p100, %p101
    %p103 = scmp.ne.s32.totalorder %s91, %s92
    %p104 = scmp.eq.s32.totalorder %s19, 1
    %p105 = por %p103, %p104
    %p107 = scmp.ne.s32.totalorder %s92, %s106
    %p108 = scmp.eq.s32.totalorder %s19, 0
    %p109 = por %p107, %p108
    %s111 = sadd.s32 %s110, 1
    %p114 = scmp.eq.s32.totalorder %s13, 1
    %p115 = scmp.ne.s32.totalorder %s110, %s112
    %p116 = scmp.eq.s32.totalorder %s13, 0
    %p117 = por %p115, %p116
    %p118 = scmp.ne.s32.totalorder %s110, %s112
    %p119 = scmp.eq.s32.totalorder %s18, 1
    %p120 = por %p118, %p119
    %p121 = scmp.ne.s32.totalorder %s112, %s113
    %p122 = scmp.eq.s32.totalorder %s18, 0
    %p123 = por %p121, %p122
    %p124 = scmp.ne.s32.totalorder %s112, %s113
    %p125 = scmp.eq.s32.totalorder %s19, 1
    %p126 = por %p124, %p125
    %p128 = scmp.ne.s32.totalorder %s113, %s127
    %p129 = scmp.eq.s32.totalorder %s19, 0
    %p130 = por %p128, %p129
    %s132 = sadd.s32 %s131, 1
    %p135 = scmp.eq.s32.totalorder %s13, 1
    %p136 = scmp.ne.s32.totalorder %s131, %s133
    %p137 = scmp.eq.s32.totalorder %s13, 0
    %p138 = por %p136, %p137
    %p139 = scmp.ne.s32.totalorder %s131, %s133
    %p140 = scmp.eq.s32.totalorder %s18, 1
    %p141 = por %p139, %p140
    %p142 = scmp.ne.s32.totalorder %s133, %s134
    %p143 = scmp.eq.s32.totalorder %s18, 0
    %p144 = por %p142, %p143
    %p145 = scmp.ne.s32.totalorder %s133, %s134
    %p146 = scmp.eq.s32.totalorder %s19, 1
    %p147 = por %p145, %p146
    %p149 = scmp.ne.s32.totalorder %s134, %s148
    %p150 = scmp.eq.s32.totalorder %s19, 0
    %p151 = por %p149, %p150
    %s153 = sadd.s32 %s152, 1
    %p156 = scmp.eq.s32.totalorder %s13, 1
    %p157 = scmp.ne.s32.totalorder %s152, %s154
    %p158 = scmp.eq.s32.totalorder %s13, 0
    %p159 = por %p157, %p158
    %p160 = scmp.ne.s32.totalorder %s152, %s154
    %p161 = scmp.eq.s32.totalorder %s18, 1
    %p162 = por %p160, %p161
    %p163 = scmp.ne.s32.totalorder %s154, %s155
    %p164 = scmp.eq.s32.totalorder %s18, 0
    %p165 = por %p163, %p164
    %p166 = scmp.ne.s32.totalorder %s154, %s155
    %p167 = scmp.eq.s32.totalorder %s19, 1
    %p168 = por %p166, %p167
    %p170 = scmp.ne.s32.totalorder %s155, %s169
    %p171 = scmp.eq.s32.totalorder %s19, 0
    %p172 = por %p170, %p171
    %s173 = ssub.s32 %s13, %s20
    %p174 = scmp.eq.s32.totalorder %s173, 0
    %s176 = sadd.s32 %s175, 1
    %s177 = scalar_select %p174, %s175, %s176
    %p180 = pneg %p174
    %p181 = scmp.eq.s32.totalorder %s13, 1
    %p182 = por %p180, %p181
    %p183 = scmp.ne.s32.totalorder %s175, %s178
    %p184 = scmp.eq.s32.totalorder %s13, 0
    %p185 = por %p183, %p184
    %p186 = scmp.ne.s32.totalorder %s175, %s178
    %p187 = scmp.eq.s32.totalorder %s18, 1
    %p188 = por %p186, %p187
    %p189 = scmp.ne.s32.totalorder %s178, %s179
    %p190 = scmp.eq.s32.totalorder %s18, 0
    %p191 = por %p189, %p190
    %p192 = scmp.ne.s32.totalorder %s178, %s179
    %p193 = scmp.eq.s32.totalorder %s19, 1
    %p194 = por %p192, %p193
    %p196 = scmp.ne.s32.totalorder %s179, %s195
    %p197 = scmp.eq.s32.totalorder %s19, 0
    %p198 = por %p196, %p197
    %p199 = scmp.le.s32.totalorder 1, %s13
    %p200 = scmp.lt.s32.totalorder %s13, 3
    %p201 = pnand %p199, %p200
    %p202 = pneg %p201
    // Predicated region
    $region9: #{tpu_custom_call.1} parent=5 // pred_check
      _
    $region10: #{tpu_custom_call.1} parent=5 // pred_check_branch
      %204 = sbr.rel (%p201) target = $region12
    $region11: #{tpu_custom_call.1} parent=5 // pred_region
      %s205 = ssub.s32 %s13, 1
      // Predicated region
      $region13: #{tpu_custom_call.1} parent=11 // pred_check
        %p206 = pneg %p60
      $region14: #{tpu_custom_call.1} parent=11 // pred_check_branch
        %208 = sbr.rel (%p206) target = $region16
      $region15: #{tpu_custom_call.1} parent=11 // pred_region
        _
      $region16: #{tpu_custom_call.1} parent=11 // pred_fallthru
        _
      // Predicated region
      $region17: #{tpu_custom_call.1} parent=11 // pred_check
        %p209 = pneg %p81
      $region18: #{tpu_custom_call.1} parent=11 // pred_check_branch
        %211 = sbr.rel (%p209) target = $region20
      $region19: #{tpu_custom_call.1} parent=11 // pred_region
        _
      $region20: #{tpu_custom_call.1} parent=11 // pred_fallthru
        _
      // Predicated region
      $region21: #{tpu_custom_call.1} parent=11 // pred_check
        %p212 = pneg %p102
      $region22: #{tpu_custom_call.1} parent=11 // pred_check_branch
        %214 = sbr.rel (%p212) target = $region24
      $region23: #{tpu_custom_call.1} parent=11 // pred_region
        _
      $region24: #{tpu_custom_call.1} parent=11 // pred_fallthru
        _
      // Predicated region
      $region25: #{tpu_custom_call.1} parent=11 // pred_check
        %p215 = pneg %p123
      $region26: #{tpu_custom_call.1} parent=11 // pred_check_branch
        %217 = sbr.rel (%p215) target = $region28
      $region27: #{tpu_custom_call.1} parent=11 // pred_region
        _
      $region28: #{tpu_custom_call.1} parent=11 // pred_fallthru
        _
      // Predicated region
      $region29: #{tpu_custom_call.1} parent=11 // pred_check
        %p218 = pneg %p144
      $region30: #{tpu_custom_call.1} parent=11 // pred_check_branch
        %220 = sbr.rel (%p218) target = $region32
      $region31: #{tpu_custom_call.1} parent=11 // pred_region
        _
      $region32: #{tpu_custom_call.1} parent=11 // pred_fallthru
        _
      // Predicated region
      $region33: #{tpu_custom_call.1} parent=11 // pred_check
        %p221 = pneg %p165
      $region34: #{tpu_custom_call.1} parent=11 // pred_check_branch
        %223 = sbr.rel (%p221) target = $region36
      $region35: #{tpu_custom_call.1} parent=11 // pred_region
        _
      $region36: #{tpu_custom_call.1} parent=11 // pred_fallthru
        _
    $region12: #{tpu_custom_call.1} parent=5 // pred_fallthru
      _
    %p224 = scmp.lt.s32.totalorder %s13, 2
    // Predicated region
    $region37: #{tpu_custom_call.1} parent=5 // pred_check
      %p225 = pneg %p224
    $region38: #{tpu_custom_call.1} parent=5 // pred_check_branch
      %227 = sbr.rel (%p225) target = $region40
    $region39: #{tpu_custom_call.1} parent=5 // pred_region
      // Predicated region
      $region41: #{tpu_custom_call.1} parent=39 // pred_check
        %p228 = pneg %p33
      $region42: #{tpu_custom_call.1} parent=39 // pred_check_branch
        %230 = sbr.rel (%p228) target = $region44
      $region43: #{tpu_custom_call.1} parent=39 // pred_region
        %p231 = scmp.lt.s32.totalorder %s13, 1
        %s232 = scalar_select %p231, %s13, 1
        %s233 = smul.addr %s232, 8
        %s234 = smul.addr %s233, 8
        %s235 = scalar_lea.vmem %s0, %s234
      $region44: #{tpu_custom_call.1} parent=39 // pred_fallthru
        _
    $region40: #{tpu_custom_call.1} parent=5 // pred_fallthru
      _
    %p236 = scmp.le.s32.totalorder 1, %s13
    %p237 = scmp.lt.s32.totalorder %s13, 3
    %p238 = pnand %p236, %p237
    %p239 = pneg %p238
    // Predicated region
    $region45: #{tpu_custom_call.1} parent=5 // pred_check
      _
    $region46: #{tpu_custom_call.1} parent=5 // pred_check_branch
      %241 = sbr.rel (%p238) target = $region48
    $region47: #{tpu_custom_call.1} parent=5 // pred_region
      %s242 = ssub.s32 %s13, 1
      %p243 = scmp.lt.s32.totalorder %s18, 1
      %s244 = scalar_select %p243, %s18, 1
      %s245 = smul.addr %s244, 8
      %s246 = smul.addr %s245, 8
      %s247 = scalar_lea.vmem %s0, %s246
      %p248 = pneg %p39
      %p249 = pneg %p36
      %p250 = pneg %p60
      %p251 = pneg %p57
      %p252 = pneg %p81
      %p253 = pneg %p78
      %p254 = pneg %p102
      %p255 = pneg %p99
      %p256 = pneg %p123
      %p257 = pneg %p120
      %p258 = pneg %p144
      %p259 = pneg %p141
      %p260 = pneg %p165
      %p261 = pneg %p162
      %p262 = pneg %p191
      %p263 = pneg %p188
      %p264 = scmp.lt.s32.totalorder %s18, 1
      %s265 = scalar_select %p264, %s18, 1
      %s266 = smul.addr %s265, 8
      %s267 = smul.addr %s266, 8
      %s268 = scalar_lea.vmem %s7, %s267
      %p269 = scmp.lt.s32.totalorder %s18, 1
      %s270 = scalar_select %p269, %s18, 1
      %s271 = smul.addr %s270, 8
      %s272 = smul.addr %s271, 8
      %s273 = scalar_lea.vmem %s0, %s272
      %p274 = scmp.lt.s32.totalorder %s18, 1
      %s275 = scalar_select %p274, %s18, 1
      %s276 = smul.addr %s275, 8
      %s277 = smul.addr %s276, 8
      %s278 = scalar_lea.vmem %s7, %s277
      %v279 = vld [vmem:[%s273] sm:$0xff]
      %v280 = vld [vmem:[%s273 + $0x8] sm:$0xff]
      %v281 = vld [vmem:[%s273 + $0x10] sm:$0xff]
      %v282 = vld [vmem:[%s273 + $0x18] sm:$0xff]
      %v283 = vld [vmem:[%s273 + $0x20] sm:$0xff]
      %v284 = vld [vmem:[%s273 + $0x28] sm:$0xff]
      %v285 = vld [vmem:[%s273 + $0x30] sm:$0xff]
      %v286 = vld [vmem:[%s273 + $0x38] sm:$0xff]
      %v287 = vld [vmem:[%s1] sm:$0xff]
      %v288 = vld [vmem:[%s1 + $0x8] sm:$0xff]
      %v289 = vld [vmem:[%s1 + $0x10] sm:$0xff]
      %v290 = vld [vmem:[%s1 + $0x18] sm:$0xff]
      %v291 = vld [vmem:[%s2] sm:$0x1]
      %v293 = vlaneseq
      %v294 = vshrl.u32 %v293, 7
      %v295 = vsub.s32 0, %v294
      %v296 = vrot.slane %v291, %v295
      %vm298 = vcmask 261120
      %v300 = vsel %vm298, %v279, 0
      %v303 = vsel %vm298, %v280, 0
      %v306 = vsel %vm298, %v281, 0
      %v309 = vsel %vm298, %v282, 0
      %v312 = vsel %vm298, %v283, 0
      %v315 = vsel %vm298, %v284, 0
      %v318 = vsel %vm298, %v285, 0
      %v321 = vsel %vm298, %v286, 0
      %323 = vmatprep.subr.mxu0 0.0
      %324 = vmatpush1.msra.mxu0 %v287
      %325 = vmatprep.subr.mxu0 0.0
      %326 = vmatpush1.msra.mxu0 %v288
      %327 = vmatprep.subr.mxu0 0.0
      %328 = vmatpush1.msra.mxu0 %v289
      %329 = vmatprep.subr.mxu0 0.0
      %330 = vmatpush1.msra.mxu0 %v290
      %331 = vmatprep.subr.mxu0 0.0
      %332 = vmatpush1.msra.mxu0 0.0
      %333 = vmatprep.subr.mxu0 0.0
      %334 = vmatpush1.msra.mxu0 0.0
      %335 = vmatprep.subr.mxu0 0.0
      %336 = vmatpush1.msra.mxu0 0.0
      %337 = vmatprep.subr.mxu0 0.0
      %338 = vmatpush1.msra.mxu0 0.0
      %339 = vmatprep.subr.mxu0 0.0
      %340 = vmatpush1.msra.mxu0 0.0
      %341 = vmatprep.subr.mxu0 0.0
      %342 = vmatpush1.msra.mxu0 0.0
      %343 = vmatprep.subr.mxu0 0.0
      %344 = vmatpush1.msra.mxu0 0.0
      %345 = vmatprep.subr.mxu0 0.0
      %346 = vmatpush1.msra.mxu0 0.0
      %347 = vmatprep.subr.mxu0 0.0
      %348 = vmatpush1.msra.mxu0 0.0
      %349 = vmatprep.subr.mxu0 0.0
      %350 = vmatpush1.msra.mxu0 0.0
      %351 = vmatprep.subr.mxu0 0.0
      %352 = vmatpush1.msra.mxu0 0.0
      %353 = vmatprep.subr.mxu0 0.0
      %354 = vmatpush1.msra.mxu0 0.0
      %355 = vmatprep.subr.mxu0 0.0
      %356 = vmatpush1.msra.mxu0 0.0
      %357 = vmatprep.subr.mxu0 0.0
      %358 = vmatpush1.msra.mxu0 0.0
      %359 = vmatprep.subr.mxu0 0.0
      %360 = vmatpush1.msra.mxu0 0.0
      %361 = vmatprep.subr.mxu0 0.0
      %362 = vmatpush1.msra.mxu0 0.0
      %363 = vmatprep.subr.mxu0 0.0
      %364 = vmatpush1.msra.mxu0 0.0
      %365 = vmatprep.subr.mxu0 0.0
      %366 = vmatpush1.msra.mxu0 0.0
      %367 = vmatprep.subr.mxu0 0.0
      %368 = vmatpush1.msra.mxu0 0.0
      %369 = vmatprep.subr.mxu0 0.0
      %370 = vmatpush1.msra.mxu0 0.0
      %371 = vmatprep.subr.mxu0 0.0
      %372 = vmatpush1.msra.mxu0 0.0
      %373 = vmatprep.subr.mxu0 0.0
      %374 = vmatpush1.msra.mxu0 0.0
      %375 = vmatprep.subr.mxu0 0.0
      %376 = vmatpush1.msra.mxu0 0.0
      %377 = vmatprep.subr.mxu0 0.0
      %378 = vmatpush1.msra.mxu0 0.0
      %379 = vmatprep.subr.mxu0 0.0
      %380 = vmatpush1.msra.mxu0 0.0
      %381 = vmatprep.subr.mxu0 0.0
      %382 = vmatpush1.msra.mxu0 0.0
      %383 = vmatprep.subr.mxu0 0.0
      %384 = vmatpush1.msra.mxu0 0.0
      %385 = vmatprep.subr.mxu0 0.0
      %386 = vmatpush1.msra.mxu0 0.0
      %387 = vmatprep.mubr.f32.mxu0 0.0
      %388 = vmatmul.mubr.f32.gmra.mrb[0].mxu0 %v300
      %v389 = vpop.f32.mrb[0].mxu0
      %v390 = vadd.f32 %v296, %v389
      %v391 = vpop.f32.mrb[0].mxu0
      %392 = vmatprep.mubr.f32.mxu0 0.0
      %393 = vmatmul.mubr.f32.gmra.mrb[0].mxu0 %v303
      %v394 = vpop.f32.mrb[0].mxu0
      %v395 = vadd.f32 %v296, %v394
      %v396 = vpop.f32.mrb[0].mxu0
      %397 = vmatprep.mubr.f32.mxu0 0.0
      %398 = vmatmul.mubr.f32.gmra.mrb[0].mxu0 %v306
      %v399 = vpop.f32.mrb[0].mxu0
      %v400 = vadd.f32 %v296, %v399
      %v401 = vpop.f32.mrb[0].mxu0
      %402 = vmatprep.mubr.f32.mxu0 0.0
      %403 = vmatmul.mubr.f32.gmra.mrb[0].mxu0 %v309
      %v404 = vpop.f32.mrb[0].mxu0
      %v405 = vadd.f32 %v296, %v404
      %v406 = vpop.f32.mrb[0].mxu0
      %407 = vmatprep.mubr.f32.mxu0 0.0
      %408 = vmatmul.mubr.f32.gmra.mrb[0].mxu0 %v312
      %v409 = vpop.f32.mrb[0].mxu0
      %v410 = vadd.f32 %v296, %v409
      %v411 = vpop.f32.mrb[0].mxu0
      %412 = vmatprep.mubr.f32.mxu0 0.0
      %413 = vmatmul.mubr.f32.gmra.mrb[0].mxu0 %v315
      %v414 = vpop.f32.mrb[0].mxu0
      %v415 = vadd.f32 %v296, %v414
      %v416 = vpop.f32.mrb[0].mxu0
      %417 = vmatprep.mubr.f32.mxu0 0.0
      %418 = vmatmul.mubr.f32.gmra.mrb[0].mxu0 %v318
      %v419 = vpop.f32.mrb[0].mxu0
      %v420 = vadd.f32 %v296, %v419
      %v421 = vpop.f32.mrb[0].mxu0
      %422 = vmatprep.mubr.f32.mxu0 0.0
      %423 = vmatmul.mubr.f32.gmra.mrb[0].mxu0 %v321
      %v424 = vpop.f32.mrb[0].mxu0
      %v425 = vadd.f32 %v296, %v424
      %v426 = vpop.f32.mrb[0].mxu0
      %427 = vdwg.mxu0
      %v428 = vmul.f32 %v390, %v390
      %v429 = vmul.f32 %v395, %v395
      %v430 = vmul.f32 %v400, %v400
      %v431 = vmul.f32 %v405, %v405
      %v432 = vmul.f32 %v410, %v410
      %v433 = vmul.f32 %v415, %v415
      %v434 = vmul.f32 %v420, %v420
      %v435 = vmul.f32 %v425, %v425
      %v436 = vmul.f32 %v390, %v428
      %v437 = vmul.f32 %v395, %v429
      %v438 = vmul.f32 %v400, %v430
      %v439 = vmul.f32 %v405, %v431
      %v440 = vmul.f32 %v410, %v432
      %v441 = vmul.f32 %v415, %v433
      %v442 = vmul.f32 %v420, %v434
      %v443 = vmul.f32 %v425, %v435
      %v444 = vmul.f32 %v436, 0.044715
      %v445 = vmul.f32 %v437, 0.044715
      %v446 = vmul.f32 %v438, 0.044715
      %v447 = vmul.f32 %v439, 0.044715
      %v448 = vmul.f32 %v440, 0.044715
      %v449 = vmul.f32 %v441, 0.044715
      %v450 = vmul.f32 %v442, 0.044715
      %v451 = vmul.f32 %v443, 0.044715
      %v452 = vadd.f32 %v390, %v444
      %v453 = vadd.f32 %v395, %v445
      %v454 = vadd.f32 %v400, %v446
      %v455 = vadd.f32 %v405, %v447
      %v456 = vadd.f32 %v410, %v448
      %v457 = vadd.f32 %v415, %v449
      %v458 = vadd.f32 %v420, %v450
      %v459 = vadd.f32 %v425, %v451
      %v460 = vmul.f32 %v452, 0.7978846
      %v461 = vmul.f32 %v453, 0.7978846
      %v462 = vmul.f32 %v454, 0.7978846
      %v463 = vmul.f32 %v455, 0.7978846
      %v464 = vmul.f32 %v456, 0.7978846
      %v465 = vmul.f32 %v457, 0.7978846
      %v466 = vmul.f32 %v458, 0.7978846
      %v467 = vmul.f32 %v459, 0.7978846
      %v468 = vtanh.pop %v460
      %v469 = vtanh.pop %v461
      %v470 = vtanh.pop %v462
      %v471 = vtanh.pop %v463
      %v472 = vtanh.pop %v464
      %v473 = vtanh.pop %v465
      %v474 = vtanh.pop %v466
      %v475 = vtanh.pop %v467
      %v476 = vadd.f32 %v468, 1.0
      %v477 = vadd.f32 %v469, 1.0
      %v478 = vadd.f32 %v470, 1.0
      %v479 = vadd.f32 %v471, 1.0
      %v480 = vadd.f32 %v472, 1.0
      %v481 = vadd.f32 %v473, 1.0
      %v482 = vadd.f32 %v474, 1.0
      %v483 = vadd.f32 %v475, 1.0
      %v484 = vmul.f32 %v476, 0.5
      %v485 = vmul.f32 %v477, 0.5
      %v486 = vmul.f32 %v478, 0.5
      %v487 = vmul.f32 %v479, 0.5
      %v488 = vmul.f32 %v480, 0.5
      %v489 = vmul.f32 %v481, 0.5
      %v490 = vmul.f32 %v482, 0.5
      %v491 = vmul.f32 %v483, 0.5
      %v492 = vmul.f32 %v390, %v484
      %v493 = vmul.f32 %v395, %v485
      %v494 = vmul.f32 %v400, %v486
      %v495 = vmul.f32 %v405, %v487
      %v496 = vmul.f32 %v410, %v488
      %v497 = vmul.f32 %v415, %v489
      %v498 = vmul.f32 %v420, %v490
      %v499 = vmul.f32 %v425, %v491
      %500 = vst [vmem:[#allocation2] sm:$0xff] 0.0
      %501 = vst [vmem:[#allocation2 + $0x8] sm:$0x3] 0.0
      %502 = vst [vmem:[#allocation2 + $0x10] sm:$0xff] 0.0
      %503 = vst [vmem:[#allocation2 + $0x18] sm:$0x3] 0.0
      %504 = vst [vmem:[#allocation2 + $0x20] sm:$0xff] 0.0
      %505 = vst [vmem:[#allocation2 + $0x28] sm:$0x3] 0.0
      %506 = vst [vmem:[#allocation2 + $0x30] sm:$0xff] 0.0
      %507 = vst [vmem:[#allocation2 + $0x38] sm:$0x3] 0.0
      %508 = vst [vmem:[#allocation2 + $0x40] sm:$0xff] 0.0
      %509 = vst [vmem:[#allocation2 + $0x48] sm:$0x3] 0.0
      %510 = vst [vmem:[#allocation2 + $0x50] sm:$0xff] 0.0
      %511 = vst [vmem:[#allocation2 + $0x58] sm:$0x3] 0.0
      %512 = vst [vmem:[#allocation2 + $0x60] sm:$0xff] 0.0
      %513 = vst [vmem:[#allocation2 + $0x68] sm:$0x3] 0.0
      %514 = vst [vmem:[#allocation2 + $0x70] sm:$0xff] 0.0
      %515 = vst [vmem:[#allocation2 + $0x78] sm:$0x3] 0.0
      %516 = vst [vmem:[#allocation2 + $0x80] sm:$0xff] 0.0
      %517 = vst [vmem:[#allocation2 + $0x88] sm:$0x3] 0.0
      %518 = vst [vmem:[#allocation2 + $0x90] sm:$0xff] 0.0
      %519 = vst [vmem:[#allocation2 + $0x98] sm:$0x3] 0.0
      %s520 = scalar_lea.vmem [#allocation2], 16
      %521 = vst [vmem:[%s520 + $0x1] sm:$0xff] %v492
      %522 = vst [vmem:[%s520 + $0x11] sm:$0xff] %v493
      %523 = vst [vmem:[%s520 + $0x21] sm:$0xff] %v494
      %524 = vst [vmem:[%s520 + $0x31] sm:$0xff] %v495
      %525 = vst [vmem:[%s520 + $0x41] sm:$0xff] %v496
      %526 = vst [vmem:[%s520 + $0x51] sm:$0xff] %v497
      %527 = vst [vmem:[%s520 + $0x61] sm:$0xff] %v498
      %528 = vst [vmem:[%s520 + $0x71] sm:$0xff] %v499
      %v529 = vld [vmem:[#allocation2] sm:$0xff]
      %v530 = vld [vmem:[#allocation2 + $0x8] sm:$0x3]
      %v531 = vld [vmem:[#allocation2 + $0x10] sm:$0xff]
      %v532 = vld [vmem:[#allocation2 + $0x18] sm:$0x3]
      %v533 = vld [vmem:[#allocation2 + $0x20] sm:$0xff]
      %v534 = vld [vmem:[#allocation2 + $0x28] sm:$0x3]
      %v535 = vld [vmem:[#allocation2 + $0x30] sm:$0xff]
      %v536 = vld [vmem:[#allocation2 + $0x38] sm:$0x3]
      %v537 = vld [vmem:[#allocation2 + $0x40] sm:$0xff]
      %v538 = vld [vmem:[#allocation2 + $0x48] sm:$0x3]
      %v539 = vld [vmem:[#allocation2 + $0x50] sm:$0xff]
      %v540 = vld [vmem:[#allocation2 + $0x58] sm:$0x3]
      %v541 = vld [vmem:[#allocation2 + $0x60] sm:$0xff]
      %v542 = vld [vmem:[#allocation2 + $0x68] sm:$0x3]
      %v543 = vld [vmem:[#allocation2 + $0x70] sm:$0xff]
      %v544 = vld [vmem:[#allocation2 + $0x78] sm:$0x3]
      %v545 = vld [vmem:[#allocation2 + $0x80] sm:$0xff]
      %v546 = vld [vmem:[#allocation2 + $0x88] sm:$0x3]
      %v547 = vld [vmem:[#allocation2 + $0x90] sm:$0xff]
      %v548 = vld [vmem:[#allocation2 + $0x98] sm:$0x3]
      %v549 = vld [vmem:[%s3] sm:$0xff]
      %v550 = vld [vmem:[%s3 + $0x8] sm:$0x1]
      %v551 = vlaneseq
      %v552 = vshrl.u32 %v551, 7
      %v553 = vsub.s32 0, %v552
      %v554 = vrot.slane %v549, %v553
      %v555 = vmul.f32 %v529, %v554
      %v556 = vmul.f32 %v531, %v554
      %v557 = vmul.f32 %v533, %v554
      %v558 = vmul.f32 %v535, %v554
      %v559 = vmul.f32 %v537, %v554
      %v560 = vmul.f32 %v539, %v554
      %v561 = vmul.f32 %v541, %v554
      %v562 = vmul.f32 %v543, %v554
      %v563 = vadd.f32 %v555, 0.0
      %v564 = vadd.f32 %v556, 0.0
      %v565 = vadd.f32 %v557, 0.0
      %v566 = vadd.f32 %v558, 0.0
      %v567 = vadd.f32 %v559, 0.0
      %v568 = vadd.f32 %v560, 0.0
      %v569 = vadd.f32 %v561, 0.0
      %v570 = vadd.f32 %v562, 0.0
      %v571 = vlaneseq
      %v572 = vshrl.u32 %v571, 7
      %v573 = vsub.s32 1, %v572
      %v574 = vrot.slane %v549, %v573
      %v575 = vmul.f32 %v529, %v574
      %v576 = vmul.f32 %v530, %v574
      %v577 = vmul.f32 %v531, %v574
      %v578 = vmul.f32 %v532, %v574
      %v579 = vmul.f32 %v533, %v574
      %v580 = vmul.f32 %v534, %v574
      %v581 = vmul.f32 %v535, %v574
      %v582 = vmul.f32 %v536, %v574
      %v583 = vmul.f32 %v537, %v574
      %v584 = vmul.f32 %v538, %v574
      %v585 = vmul.f32 %v539, %v574
      %v586 = vmul.f32 %v540, %v574
      %v587 = vmul.f32 %v541, %v574
      %v588 = vmul.f32 %v542, %v574
      %v589 = vmul.f32 %v543, %v574
      %v590 = vmul.f32 %v544, %v574
      %vm607 = vcmask 1046528
      %v608 = vrot.slane %v575, 1
      %v609 = vrot.slane %v576, 1
      %v610 = vsel %vm607, %v608, %v609
      %v611 = vrot.slane %v577, 1
      %v612 = vrot.slane %v578, 1
      %v613 = vsel %vm607, %v611, %v612
      %v614 = vrot.slane %v579, 1
      %v615 = vrot.slane %v580, 1
      %v616 = vsel %vm607, %v614, %v615
      %v617 = vrot.slane %v581, 1
      %v618 = vrot.slane %v582, 1
      %v619 = vsel %vm607, %v617, %v618
      %v620 = vrot.slane %v583, 1
      %v621 = vrot.slane %v584, 1
      %v622 = vsel %vm607, %v620, %v621
      %v623 = vrot.slane %v585, 1
      %v624 = vrot.slane %v586, 1
      %v625 = vsel %vm607, %v623, %v624
      %v626 = vrot.slane %v587, 1
      %v627 = vrot.slane %v588, 1
      %v628 = vsel %vm607, %v626, %v627
      %v629 = vrot.slane %v589, 1
      %v630 = vrot.slane %v590, 1
      %v631 = vsel %vm607, %v629, %v630
      %v640 = vadd.f32 %v563, %v610
      %v641 = vadd.f32 %v564, %v613
      %v642 = vadd.f32 %v565, %v616
      %v643 = vadd.f32 %v566, %v619
      %v644 = vadd.f32 %v567, %v622
      %v645 = vadd.f32 %v568, %v625
      %v646 = vadd.f32 %v569, %v628
      %v647 = vadd.f32 %v570, %v631
      %v648 = vlaneseq
      %v649 = vshrl.u32 %v648, 7
      %v650 = vsub.s32 2, %v649
      %v651 = vrot.slane %v549, %v650
      %v652 = vmul.f32 %v529, %v651
      %v653 = vmul.f32 %v530, %v651
      %v654 = vmul.f32 %v531, %v651
      %v655 = vmul.f32 %v532, %v651
      %v656 = vmul.f32 %v533, %v651
      %v657 = vmul.f32 %v534, %v651
      %v658 = vmul.f32 %v535, %v651
      %v659 = vmul.f32 %v536, %v651
      %v660 = vmul.f32 %v537, %v651
      %v661 = vmul.f32 %v538, %v651
      %v662 = vmul.f32 %v539, %v651
      %v663 = vmul.f32 %v540, %v651
      %v664 = vmul.f32 %v541, %v651
      %v665 = vmul.f32 %v542, %v651
      %v666 = vmul.f32 %v543, %v651
      %v667 = vmul.f32 %v544, %v651
      %vm684 = vcmask 1045504
      %v685 = vrot.slane %v652, 2
      %v686 = vrot.slane %v653, 2
      %v687 = vsel %vm684, %v685, %v686
      %v688 = vrot.slane %v654, 2
      %v689 = vrot.slane %v655, 2
      %v690 = vsel %vm684, %v688, %v689
      %v691 = vrot.slane %v656, 2
      %v692 = vrot.slane %v657, 2
      %v693 = vsel %vm684, %v691, %v692
      %v694 = vrot.slane %v658, 2
      %v695 = vrot.slane %v659, 2
      %v696 = vsel %vm684, %v694, %v695
      %v697 = vrot.slane %v660, 2
      %v698 = vrot.slane %v661, 2
      %v699 = vsel %vm684, %v697, %v698
      %v700 = vrot.slane %v662, 2
      %v701 = vrot.slane %v663, 2
      %v702 = vsel %vm684, %v700, %v701
      %v703 = vrot.slane %v664, 2
      %v704 = vrot.slane %v665, 2
      %v705 = vsel %vm684, %v703, %v704
      %v706 = vrot.slane %v666, 2
      %v707 = vrot.slane %v667, 2
      %v708 = vsel %vm684, %v706, %v707
      %v717 = vadd.f32 %v640, %v687
      %v718 = vadd.f32 %v641, %v690
      %v719 = vadd.f32 %v642, %v693
      %v720 = vadd.f32 %v643, %v696
      %v721 = vadd.f32 %v644, %v699
      %v722 = vadd.f32 %v645, %v702
      %v723 = vadd.f32 %v646, %v705
      %v724 = vadd.f32 %v647, %v708
      %v725 = vlaneseq
      %v726 = vshrl.u32 %v725, 7
      %v727 = vsub.s32 3, %v726
      %v728 = vrot.slane %v549, %v727
      %v729 = vmul.f32 %v531, %v728
      %v730 = vmul.f32 %v533, %v728
      %v731 = vmul.f32 %v535, %v728
      %v732 = vmul.f32 %v537, %v728
      %v733 = vmul.f32 %v539, %v728
      %v734 = vmul.f32 %v541, %v728
      %v735 = vmul.f32 %v543, %v728
      %v736 = vmul.f32 %v545, %v728
      %v737 = vadd.f32 %v717, %v729
      %v738 = vadd.f32 %v718, %v730
      %v739 = vadd.f32 %v719, %v731
      %v740 = vadd.f32 %v720, %v732
      %v741 = vadd.f32 %v721, %v733
      %v742 = vadd.f32 %v722, %v734
      %v743 = vadd.f32 %v723, %v735
      %v744 = vadd.f32 %v724, %v736
      %v745 = vlaneseq
      %v746 = vshrl.u32 %v745, 7
      %v747 = vsub.s32 4, %v746
      %v748 = vrot.slane %v549, %v747
      %v749 = vmul.f32 %v531, %v748
      %v750 = vmul.f32 %v532, %v748
      %v751 = vmul.f32 %v533, %v748
      %v752 = vmul.f32 %v534, %v748
      %v753 = vmul.f32 %v535, %v748
      %v754 = vmul.f32 %v536, %v748
      %v755 = vmul.f32 %v537, %v748
      %v756 = vmul.f32 %v538, %v748
      %v757 = vmul.f32 %v539, %v748
      %v758 = vmul.f32 %v540, %v748
      %v759 = vmul.f32 %v541, %v748
      %v760 = vmul.f32 %v542, %v748
      %v761 = vmul.f32 %v543, %v748
      %v762 = vmul.f32 %v544, %v748
      %v763 = vmul.f32 %v545, %v748
      %v764 = vmul.f32 %v546, %v748
      %v781 = vrot.slane %v749, 1
      %v782 = vrot.slane %v750, 1
      %v783 = vsel %vm607, %v781, %v782
      %v784 = vrot.slane %v751, 1
      %v785 = vrot.slane %v752, 1
      %v786 = vsel %vm607, %v784, %v785
      %v787 = vrot.slane %v753, 1
      %v788 = vrot.slane %v754, 1
      %v789 = vsel %vm607, %v787, %v788
      %v790 = vrot.slane %v755, 1
      %v791 = vrot.slane %v756, 1
      %v792 = vsel %vm607, %v790, %v791
      %v793 = vrot.slane %v757, 1
      %v794 = vrot.slane %v758, 1
      %v795 = vsel %vm607, %v793, %v794
      %v796 = vrot.slane %v759, 1
      %v797 = vrot.slane %v760, 1
      %v798 = vsel %vm607, %v796, %v797
      %v799 = vrot.slane %v761, 1
      %v800 = vrot.slane %v762, 1
      %v801 = vsel %vm607, %v799, %v800
      %v802 = vrot.slane %v763, 1
      %v803 = vrot.slane %v764, 1
      %v804 = vsel %vm607, %v802, %v803
      %v813 = vadd.f32 %v737, %v783
      %v814 = vadd.f32 %v738, %v786
      %v815 = vadd.f32 %v739, %v789
      %v816 = vadd.f32 %v740, %v792
      %v817 = vadd.f32 %v741, %v795
      %v818 = vadd.f32 %v742, %v798
      %v819 = vadd.f32 %v743, %v801
      %v820 = vadd.f32 %v744, %v804
      %v821 = vlaneseq
      %v822 = vshrl.u32 %v821, 7
      %v823 = vsub.s32 5, %v822
      %v824 = vrot.slane %v549, %v823
      %v825 = vmul.f32 %v531, %v824
      %v826 = vmul.f32 %v532, %v824
      %v827 = vmul.f32 %v533, %v824
      %v828 = vmul.f32 %v534, %v824
      %v829 = vmul.f32 %v535, %v824
      %v830 = vmul.f32 %v536, %v824
      %v831 = vmul.f32 %v537, %v824
      %v832 = vmul.f32 %v538, %v824
      %v833 = vmul.f32 %v539, %v824
      %v834 = vmul.f32 %v540, %v824
      %v835 = vmul.f32 %v541, %v824
      %v836 = vmul.f32 %v542, %v824
      %v837 = vmul.f32 %v543, %v824
      %v838 = vmul.f32 %v544, %v824
      %v839 = vmul.f32 %v545, %v824
      %v840 = vmul.f32 %v546, %v824
      %v857 = vrot.slane %v825, 2
      %v858 = vrot.slane %v826, 2
      %v859 = vsel %vm684, %v857, %v858
      %v860 = vrot.slane %v827, 2
      %v861 = vrot.slane %v828, 2
      %v862 = vsel %vm684, %v860, %v861
      %v863 = vrot.slane %v829, 2
      %v864 = vrot.slane %v830, 2
      %v865 = vsel %vm684, %v863, %v864
      %v866 = vrot.slane %v831, 2
      %v867 = vrot.slane %v832, 2
      %v868 = vsel %vm684, %v866, %v867
      %v869 = vrot.slane %v833, 2
      %v870 = vrot.slane %v834, 2
      %v871 = vsel %vm684, %v869, %v870
      %v872 = vrot.slane %v835, 2
      %v873 = vrot.slane %v836, 2
      %v874 = vsel %vm684, %v872, %v873
      %v875 = vrot.slane %v837, 2
      %v876 = vrot.slane %v838, 2
      %v877 = vsel %vm684, %v875, %v876
      %v878 = vrot.slane %v839, 2
      %v879 = vrot.slane %v840, 2
      %v880 = vsel %vm684, %v878, %v879
      %v889 = vadd.f32 %v813, %v859
      %v890 = vadd.f32 %v814, %v862
      %v891 = vadd.f32 %v815, %v865
      %v892 = vadd.f32 %v816, %v868
      %v893 = vadd.f32 %v817, %v871
      %v894 = vadd.f32 %v818, %v874
      %v895 = vadd.f32 %v819, %v877
      %v896 = vadd.f32 %v820, %v880
      %v897 = vlaneseq
      %v898 = vshrl.u32 %v897, 7
      %v899 = vsub.s32 6, %v898
      %v900 = vrot.slane %v549, %v899
      %v901 = vmul.f32 %v533, %v900
      %v902 = vmul.f32 %v535, %v900
      %v903 = vmul.f32 %v537, %v900
      %v904 = vmul.f32 %v539, %v900
      %v905 = vmul.f32 %v541, %v900
      %v906 = vmul.f32 %v543, %v900
      %v907 = vmul.f32 %v545, %v900
      %v908 = vmul.f32 %v547, %v900
      %v909 = vadd.f32 %v889, %v901
      %v910 = vadd.f32 %v890, %v902
      %v911 = vadd.f32 %v891, %v903
      %v912 = vadd.f32 %v892, %v904
      %v913 = vadd.f32 %v893, %v905
      %v914 = vadd.f32 %v894, %v906
      %v915 = vadd.f32 %v895, %v907
      %v916 = vadd.f32 %v896, %v908
      %v917 = vlaneseq
      %v918 = vshrl.u32 %v917, 7
      %v919 = vsub.s32 7, %v918
      %v920 = vrot.slane %v549, %v919
      %v921 = vmul.f32 %v533, %v920
      %v922 = vmul.f32 %v534, %v920
      %v923 = vmul.f32 %v535, %v920
      %v924 = vmul.f32 %v536, %v920
      %v925 = vmul.f32 %v537, %v920
      %v926 = vmul.f32 %v538, %v920
      %v927 = vmul.f32 %v539, %v920
      %v928 = vmul.f32 %v540, %v920
      %v929 = vmul.f32 %v541, %v920
      %v930 = vmul.f32 %v542, %v920
      %v931 = vmul.f32 %v543, %v920
      %v932 = vmul.f32 %v544, %v920
      %v933 = vmul.f32 %v545, %v920
      %v934 = vmul.f32 %v546, %v920
      %v935 = vmul.f32 %v547, %v920
      %v936 = vmul.f32 %v548, %v920
      %v953 = vrot.slane %v921, 1
      %v954 = vrot.slane %v922, 1
      %v955 = vsel %vm607, %v953, %v954
      %v956 = vrot.slane %v923, 1
      %v957 = vrot.slane %v924, 1
      %v958 = vsel %vm607, %v956, %v957
      %v959 = vrot.slane %v925, 1
      %v960 = vrot.slane %v926, 1
      %v961 = vsel %vm607, %v959, %v960
      %v962 = vrot.slane %v927, 1
      %v963 = vrot.slane %v928, 1
      %v964 = vsel %vm607, %v962, %v963
      %v965 = vrot.slane %v929, 1
      %v966 = vrot.slane %v930, 1
      %v967 = vsel %vm607, %v965, %v966
      %v968 = vrot.slane %v931, 1
      %v969 = vrot.slane %v932, 1
      %v970 = vsel %vm607, %v968, %v969
      %v971 = vrot.slane %v933, 1
      %v972 = vrot.slane %v934, 1
      %v973 = vsel %vm607, %v971, %v972
      %v974 = vrot.slane %v935, 1
      %v975 = vrot.slane %v936, 1
      %v976 = vsel %vm607, %v974, %v975
      %v985 = vadd.f32 %v909, %v955
      %v986 = vadd.f32 %v910, %v958
      %v987 = vadd.f32 %v911, %v961
      %v988 = vadd.f32 %v912, %v964
      %v989 = vadd.f32 %v913, %v967
      %v990 = vadd.f32 %v914, %v970
      %v991 = vadd.f32 %v915, %v973
      %v992 = vadd.f32 %v916, %v976
      %v993 = vlaneseq
      %v994 = vshrl.u32 %v993, 7
      %v995 = vsub.s32 0, %v994
      %v996 = vrot.slane %v550, %v995
      %v997 = vmul.f32 %v533, %v996
      %v998 = vmul.f32 %v534, %v996
      %v999 = vmul.f32 %v535, %v996
      %v1000 = vmul.f32 %v536, %v996
      %v1001 = vmul.f32 %v537, %v996
      %v1002 = vmul.f32 %v538, %v996
      %v1003 = vmul.f32 %v539, %v996
      %v1004 = vmul.f32 %v540, %v996
      %v1005 = vmul.f32 %v541, %v996
      %v1006 = vmul.f32 %v542, %v996
      %v1007 = vmul.f32 %v543, %v996
      %v1008 = vmul.f32 %v544, %v996
      %v1009 = vmul.f32 %v545, %v996
      %v1010 = vmul.f32 %v546, %v996
      %v1011 = vmul.f32 %v547, %v996
      %v1012 = vmul.f32 %v548, %v996
      %v1029 = vrot.slane %v997, 2
      %v1030 = vrot.slane %v998, 2
      %v1031 = vsel %vm684, %v1029, %v1030
      %v1032 = vrot.slane %v999, 2
      %v1033 = vrot.slane %v1000, 2
      %v1034 = vsel %vm684, %v1032, %v1033
      %v1035 = vrot.slane %v1001, 2
      %v1036 = vrot.slane %v1002, 2
      %v1037 = vsel %vm684, %v1035, %v1036
      %v1038 = vrot.slane %v1003, 2
      %v1039 = vrot.slane %v1004, 2
      %v1040 = vsel %vm684, %v1038, %v1039
      %v1041 = vrot.slane %v1005, 2
      %v1042 = vrot.slane %v1006, 2
      %v1043 = vsel %vm684, %v1041, %v1042
      %v1044 = vrot.slane %v1007, 2
      %v1045 = vrot.slane %v1008, 2
      %v1046 = vsel %vm684, %v1044, %v1045
      %v1047 = vrot.slane %v1009, 2
      %v1048 = vrot.slane %v1010, 2
      %v1049 = vsel %vm684, %v1047, %v1048
      %v1050 = vrot.slane %v1011, 2
      %v1051 = vrot.slane %v1012, 2
      %v1052 = vsel %vm684, %v1050, %v1051
      %v1061 = vadd.f32 %v985, %v1031
      %v1062 = vadd.f32 %v986, %v1034
      %v1063 = vadd.f32 %v987, %v1037
      %v1064 = vadd.f32 %v988, %v1040
      %v1065 = vadd.f32 %v989, %v1043
      %v1066 = vadd.f32 %v990, %v1046
      %v1067 = vadd.f32 %v991, %v1049
      %v1068 = vadd.f32 %v992, %v1052
      %v1069 = vld [vmem:[%s4] sm:$0x1]
      %v1071 = vlaneseq
      %v1072 = vshrl.u32 %v1071, 7
      %v1073 = vsub.s32 0, %v1072
      %v1074 = vrot.slane %v1069, %v1073
      %v1076 = vadd.f32 %v1061, %v1074
      %v1077 = vadd.f32 %v1062, %v1074
      %v1078 = vadd.f32 %v1063, %v1074
      %v1079 = vadd.f32 %v1064, %v1074
      %v1080 = vadd.f32 %v1065, %v1074
      %v1081 = vadd.f32 %v1066, %v1074
      %v1082 = vadd.f32 %v1067, %v1074
      %v1083 = vadd.f32 %v1068, %v1074
      %v1084 = vmul.f32 %v1076, %v1076
      %v1085 = vmul.f32 %v1077, %v1077
      %v1086 = vmul.f32 %v1078, %v1078
      %v1087 = vmul.f32 %v1079, %v1079
      %v1088 = vmul.f32 %v1080, %v1080
      %v1089 = vmul.f32 %v1081, %v1081
      %v1090 = vmul.f32 %v1082, %v1082
      %v1091 = vmul.f32 %v1083, %v1083
      %v1092 = vmul.f32 %v1076, %v1084
      %v1093 = vmul.f32 %v1077, %v1085
      %v1094 = vmul.f32 %v1078, %v1086
      %v1095 = vmul.f32 %v1079, %v1087
      %v1096 = vmul.f32 %v1080, %v1088
      %v1097 = vmul.f32 %v1081, %v1089
      %v1098 = vmul.f32 %v1082, %v1090
      %v1099 = vmul.f32 %v1083, %v1091
      %v1100 = vmul.f32 %v1092, 0.044715
      %v1101 = vmul.f32 %v1093, 0.044715
      %v1102 = vmul.f32 %v1094, 0.044715
      %v1103 = vmul.f32 %v1095, 0.044715
      %v1104 = vmul.f32 %v1096, 0.044715
      %v1105 = vmul.f32 %v1097, 0.044715
      %v1106 = vmul.f32 %v1098, 0.044715
      %v1107 = vmul.f32 %v1099, 0.044715
      %v1108 = vadd.f32 %v1076, %v1100
      %v1109 = vadd.f32 %v1077, %v1101
      %v1110 = vadd.f32 %v1078, %v1102
      %v1111 = vadd.f32 %v1079, %v1103
      %v1112 = vadd.f32 %v1080, %v1104
      %v1113 = vadd.f32 %v1081, %v1105
      %v1114 = vadd.f32 %v1082, %v1106
      %v1115 = vadd.f32 %v1083, %v1107
      %v1116 = vmul.f32 %v1108, 0.7978846
      %v1117 = vmul.f32 %v1109, 0.7978846
      %v1118 = vmul.f32 %v1110, 0.7978846
      %v1119 = vmul.f32 %v1111, 0.7978846
      %v1120 = vmul.f32 %v1112, 0.7978846
      %v1121 = vmul.f32 %v1113, 0.7978846
      %v1122 = vmul.f32 %v1114, 0.7978846
      %v1123 = vmul.f32 %v1115, 0.7978846
      %v1124 = vtanh.pop %v1116
      %v1125 = vtanh.pop %v1117
      %v1126 = vtanh.pop %v1118
      %v1127 = vtanh.pop %v1119
      %v1128 = vtanh.pop %v1120
      %v1129 = vtanh.pop %v1121
      %v1130 = vtanh.pop %v1122
      %v1131 = vtanh.pop %v1123
      %v1132 = vadd.f32 %v1124, 1.0
      %v1133 = vadd.f32 %v1125, 1.0
      %v1134 = vadd.f32 %v1126, 1.0
      %v1135 = vadd.f32 %v1127, 1.0
      %v1136 = vadd.f32 %v1128, 1.0
      %v1137 = vadd.f32 %v1129, 1.0
      %v1138 = vadd.f32 %v1130, 1.0
      %v1139 = vadd.f32 %v1131, 1.0
      %v1140 = vmul.f32 %v1132, 0.5
      %v1141 = vmul.f32 %v1133, 0.5
      %v1142 = vmul.f32 %v1134, 0.5
      %v1143 = vmul.f32 %v1135, 0.5
      %v1144 = vmul.f32 %v1136, 0.5
      %v1145 = vmul.f32 %v1137, 0.5
      %v1146 = vmul.f32 %v1138, 0.5
      %v1147 = vmul.f32 %v1139, 0.5
      %v1148 = vmul.f32 %v1076, %v1140
      %v1149 = vmul.f32 %v1077, %v1141
      %v1150 = vmul.f32 %v1078, %v1142
      %v1151 = vmul.f32 %v1079, %v1143
      %v1152 = vmul.f32 %v1080, %v1144
      %v1153 = vmul.f32 %v1081, %v1145
      %v1154 = vmul.f32 %v1082, %v1146
      %v1155 = vmul.f32 %v1083, %v1147
      %v1156 = vld [vmem:[%s5] sm:$0xff]
      %v1157 = vld [vmem:[%s5 + $0x8] sm:$0xff]
      %v1158 = vld [vmem:[%s5 + $0x10] sm:$0xff]
      %v1159 = vld [vmem:[%s5 + $0x18] sm:$0xff]
      %v1160 = vld [vmem:[%s5 + $0x20] sm:$0xff]
      %v1161 = vld [vmem:[%s5 + $0x28] sm:$0xff]
      %v1162 = vld [vmem:[%s5 + $0x30] sm:$0xff]
      %v1163 = vld [vmem:[%s5 + $0x38] sm:$0xff]
      %v1164 = vld [vmem:[%s5 + $0x40] sm:$0xff]
      %v1165 = vld [vmem:[%s5 + $0x48] sm:$0xff]
      %v1166 = vld [vmem:[%s5 + $0x50] sm:$0xff]
      %v1167 = vld [vmem:[%s5 + $0x58] sm:$0xff]
      %v1168 = vld [vmem:[%s5 + $0x60] sm:$0xff]
      %v1169 = vld [vmem:[%s5 + $0x68] sm:$0xff]
      %v1170 = vld [vmem:[%s5 + $0x70] sm:$0xff]
      %v1171 = vld [vmem:[%s5 + $0x78] sm:$0xff]
      %v1172 = vld [vmem:[%s6] sm:$0x1]
      %v1174 = vlaneseq
      %v1175 = vshrl.u32 %v1174, 7
      %v1176 = vsub.s32 0, %v1175
      %v1177 = vrot.slane %v1172, %v1176
      %1179 = vmatprep.subr.mxu0 0.0
      %1180 = vmatpush1.msra.mxu0 %v1156
      %1181 = vmatprep.subr.mxu0 0.0
      %1182 = vmatpush1.msra.mxu0 %v1157
      %1183 = vmatprep.subr.mxu0 0.0
      %1184 = vmatpush1.msra.mxu0 %v1158
      %1185 = vmatprep.subr.mxu0 0.0
      %1186 = vmatpush1.msra.mxu0 %v1159
      %1187 = vmatprep.subr.mxu0 0.0
      %1188 = vmatpush1.msra.mxu0 %v1160
      %1189 = vmatprep.subr.mxu0 0.0
      %1190 = vmatpush1.msra.mxu0 %v1161
      %1191 = vmatprep.subr.mxu0 0.0
      %1192 = vmatpush1.msra.mxu0 %v1162
      %1193 = vmatprep.subr.mxu0 0.0
      %1194 = vmatpush1.msra.mxu0 %v1163
      %1195 = vmatprep.subr.mxu0 0.0
      %1196 = vmatpush1.msra.mxu0 %v1164
      %1197 = vmatprep.subr.mxu0 0.0
      %1198 = vmatpush1.msra.mxu0 %v1165
      %1199 = vmatprep.subr.mxu0 0.0
      %1200 = vmatpush1.msra.mxu0 %v1166
      %1201 = vmatprep.subr.mxu0 0.0
      %1202 = vmatpush1.msra.mxu0 %v1167
      %1203 = vmatprep.subr.mxu0 0.0
      %1204 = vmatpush1.msra.mxu0 %v1168
      %1205 = vmatprep.subr.mxu0 0.0
      %1206 = vmatpush1.msra.mxu0 %v1169
      %1207 = vmatprep.subr.mxu0 0.0
      %1208 = vmatpush1.msra.mxu0 %v1170
      %1209 = vmatprep.subr.mxu0 0.0
      %1210 = vmatpush1.msra.mxu0 %v1171
      %1211 = vmatprep.subr.mxu0 0.0
      %1212 = vmatpush1.msra.mxu0 0.0
      %1213 = vmatprep.subr.mxu0 0.0
      %1214 = vmatpush1.msra.mxu0 0.0
      %1215 = vmatprep.subr.mxu0 0.0
      %1216 = vmatpush1.msra.mxu0 0.0
      %1217 = vmatprep.subr.mxu0 0.0
      %1218 = vmatpush1.msra.mxu0 0.0
      %1219 = vmatprep.subr.mxu0 0.0
      %1220 = vmatpush1.msra.mxu0 0.0
      %1221 = vmatprep.subr.mxu0 0.0
      %1222 = vmatpush1.msra.mxu0 0.0
      %1223 = vmatprep.subr.mxu0 0.0
      %1224 = vmatpush1.msra.mxu0 0.0
      %1225 = vmatprep.subr.mxu0 0.0
      %1226 = vmatpush1.msra.mxu0 0.0
      %1227 = vmatprep.subr.mxu0 0.0
      %1228 = vmatpush1.msra.mxu0 0.0
      %1229 = vmatprep.subr.mxu0 0.0
      %1230 = vmatpush1.msra.mxu0 0.0
      %1231 = vmatprep.subr.mxu0 0.0
      %1232 = vmatpush1.msra.mxu0 0.0
      %1233 = vmatprep.subr.mxu0 0.0
      %1234 = vmatpush1.msra.mxu0 0.0
      %1235 = vmatprep.subr.mxu0 0.0
      %1236 = vmatpush1.msra.mxu0 0.0
      %1237 = vmatprep.subr.mxu0 0.0
      %1238 = vmatpush1.msra.mxu0 0.0
      %1239 = vmatprep.subr.mxu0 0.0
      %1240 = vmatpush1.msra.mxu0 0.0
      %1241 = vmatprep.subr.mxu0 0.0
      %1242 = vmatpush1.msra.mxu0 0.0
      %1243 = vmatprep.mubr.f32.mxu0 0.0
      %1244 = vmatmul.mubr.f32.gmra.mrb[0].mxu0 %v1148
      %v1245 = vpop.f32.mrb[0].mxu0
      %v1246 = vadd.f32 %v1177, %v1245
      %v1247 = vpop.f32.mrb[0].mxu0
      %1248 = vmatprep.mubr.f32.mxu0 0.0
      %1249 = vmatmul.mubr.f32.gmra.mrb[0].mxu0 %v1149
      %v1250 = vpop.f32.mrb[0].mxu0
      %v1251 = vadd.f32 %v1177, %v1250
      %v1252 = vpop.f32.mrb[0].mxu0
      %1253 = vmatprep.mubr.f32.mxu0 0.0
      %1254 = vmatmul.mubr.f32.gmra.mrb[0].mxu0 %v1150
      %v1255 = vpop.f32.mrb[0].mxu0
      %v1256 = vadd.f32 %v1177, %v1255
      %v1257 = vpop.f32.mrb[0].mxu0
      %1258 = vmatprep.mubr.f32.mxu0 0.0
      %1259 = vmatmul.mubr.f32.gmra.mrb[0].mxu0 %v1151
      %v1260 = vpop.f32.mrb[0].mxu0
      %v1261 = vadd.f32 %v1177, %v1260
      %v1262 = vpop.f32.mrb[0].mxu0
      %1263 = vmatprep.mubr.f32.mxu0 0.0
      %1264 = vmatmul.mubr.f32.gmra.mrb[0].mxu0 %v1152
      %v1265 = vpop.f32.mrb[0].mxu0
      %v1266 = vadd.f32 %v1177, %v1265
      %v1267 = vpop.f32.mrb[0].mxu0
      %1268 = vmatprep.mubr.f32.mxu0 0.0
      %1269 = vmatmul.mubr.f32.gmra.mrb[0].mxu0 %v1153
      %v1270 = vpop.f32.mrb[0].mxu0
      %v1271 = vadd.f32 %v1177, %v1270
      %v1272 = vpop.f32.mrb[0].mxu0
      %1273 = vmatprep.mubr.f32.mxu0 0.0
      %1274 = vmatmul.mubr.f32.gmra.mrb[0].mxu0 %v1154
      %v1275 = vpop.f32.mrb[0].mxu0
      %v1276 = vadd.f32 %v1177, %v1275
      %v1277 = vpop.f32.mrb[0].mxu0
      %1278 = vmatprep.mubr.f32.mxu0 0.0
      %1279 = vmatmul.mubr.f32.gmra.mrb[0].mxu0 %v1155
      %v1280 = vpop.f32.mrb[0].mxu0
      %v1281 = vadd.f32 %v1177, %v1280
      %v1282 = vpop.f32.mrb[0].mxu0
      %1283 = vdwg.mxu0
      %1284 = vst.msk [vmem:[%s278] sm:$0xff] %vm298, %v1246
      %1285 = vst.msk [vmem:[%s278 + $0x8] sm:$0xff] %vm298, %v1251
      %1286 = vst.msk [vmem:[%s278 + $0x10] sm:$0xff] %vm298, %v1256
      %1287 = vst.msk [vmem:[%s278 + $0x18] sm:$0xff] %vm298, %v1261
      %1288 = vst.msk [vmem:[%s278 + $0x20] sm:$0xff] %vm298, %v1266
      %1289 = vst.msk [vmem:[%s278 + $0x28] sm:$0xff] %vm298, %v1271
      %1290 = vst.msk [vmem:[%s278 + $0x30] sm:$0xff] %vm298, %v1276
      %1291 = vst.msk [vmem:[%s278 + $0x38] sm:$0xff] %vm298, %v1281
      %p1292 = scmp.lt.s32.totalorder %s18, 1
      %s1293 = scalar_select %p1292, %s18, 1
      %s1294 = smul.addr %s1293, 8
      %s1295 = smul.addr %s1294, 8
      %s1296 = scalar_lea.vmem %s7, %s1295
      // Predicated region
      $region49: #{tpu_custom_call.1} parent=47 // pred_check
        %p1297 = pneg %p188
      $region50: #{tpu_custom_call.1} parent=47 // pred_check_branch
        %1299 = sbr.rel (%p1297) target = $region52
      $region51: #{tpu_custom_call.1} parent=47 // pred_region
        _
      $region52: #{tpu_custom_call.1} parent=47 // pred_fallthru
        _
    $region48: #{tpu_custom_call.1} parent=5 // pred_fallthru
      _
    %p1300 = scmp.le.s32.totalorder 2, %s13
    // Predicated region
    $region53: #{tpu_custom_call.1} parent=5 // pred_check
      %p1301 = pneg %p1300
    $region54: #{tpu_custom_call.1} parent=5 // pred_check_branch
      %1303 = sbr.rel (%p1301) target = $region56
    $region55: #{tpu_custom_call.1} parent=5 // pred_region
      %s1304 = ssub.s32 %s13, 2
      // Predicated region
      $region57: #{tpu_custom_call.1} parent=55 // pred_check
        %p1305 = pneg %p194
      $region58: #{tpu_custom_call.1} parent=55 // pred_check_branch
        %1307 = sbr.rel (%p1305) target = $region60
      $region59: #{tpu_custom_call.1} parent=55 // pred_region
        %p1308 = scmp.lt.s32.totalorder %s19, 1
        %s1309 = scalar_select %p1308, %s19, 1
        %s1310 = smul.addr %s1309, 8
        %s1311 = smul.addr %s1310, 8
        %s1312 = scalar_lea.vmem %s7, %s1311
      $region60: #{tpu_custom_call.1} parent=55 // pred_fallthru
        _
    $region56: #{tpu_custom_call.1} parent=5 // pred_fallthru
      _
  $region6: #{tpu_custom_call.1} parent=0 // loop_footer
    %s17 = sadd.s32 1, %s13
  $region7: #{tpu_custom_call.1} parent=0 // loop_footer_branch
    %12 = sbr.rel target = $region3
  $region8: #{tpu_custom_call.1} parent=0 // loop_exit
    _

</llo_original>
